<compile_context>
chip_gen: v7x
topology: tpu7x:2x2x1
jax: 0.10.0
libtpu: 0.0.40
codegen_flags: <defaults>
</compile_context>

<pallas_src>
import math
import functools

import jax
import jax.numpy as jnp
from jax.experimental import pallas as pl
from jax.experimental.pallas import tpu as pltpu


def B(rho):
    return 0.0 if rho == 1 else (math.sqrt(1 - (rho - 1) ** 2) - 1) / (rho - 1)


def _abrelu_kernel(x_ref, o_ref, *, b):
    x = x_ref[...]
    if b == 0.0:
        # rho == 1 -> plain ReLU
        o_ref[...] = jnp.maximum(x, jnp.zeros((), x.dtype))
        return
    # Compute the scaled branch in f32 for non-float dtypes so fractional b is
    # not truncated (e.g. int8); floats compute in their own precision.
    compute_dtype = x.dtype if jnp.issubdtype(x.dtype, jnp.floating) else jnp.float32
    xf = x.astype(compute_dtype)
    bx = jnp.asarray(b, compute_dtype) * xf
    if b <= 1.0:
        # b*min(x,0) + max(x,0) == max(x, b*x) whenever b <= 1
        y = jnp.maximum(xf, bx)
    else:
        # ... and == min(x, b*x) whenever b >= 1
        y = jnp.minimum(xf, bx)
    o_ref[...] = y.astype(o_ref.dtype)


_TARGET_BLOCK_BYTES = 8 * 1024 * 1024      # ~8 MiB per buffer
_VMEM_LIMIT_BYTES = 48 * 1024 * 1024       # 4 buffers x 8 MiB + headroom; <64 MiB (v7x)


def _sublane_multiple(dtype):
    itemsize = jnp.dtype(dtype).itemsize
    return {4: 8, 2: 16, 1: 32}.get(itemsize, 8)


def _pick_lanes(total):
    """Largest lane width (multiple of 128, <= 8192) that divides total."""
    for cand in (8192, 4096, 2048, 1024, 512, 256, 128):
        if total % cand == 0:
            return cand
    return None


def _run_2d(x2d, b):
    rows, lanes = x2d.shape
    itemsize = jnp.dtype(x2d.dtype).itemsize
    sub = _sublane_multiple(x2d.dtype)

    # Biggest block that fits the VMEM budget (multiple of the sublane tile).
    target_rows = max(sub, (_TARGET_BLOCK_BYTES // (lanes * itemsize)) // sub * sub)

    if rows > 2 * sub:
        # Cap so the grid has >= 2 steps: v7x shards grid steps across its two
        # TensorCores, so a 1-step grid would leave half the chip idle.
        half_rows = max(sub, (rows // (2 * sub)) * sub)
        block_rows = min(target_rows, half_rows)
    else:
        # Tiny input: a full-dim block is always a legal tile.
        block_rows = min(rows, target_rows)

    grid = (-(-rows // block_rows),)  # cdiv; partial last block is masked by Pallas
    kernel = functools.partial(_abrelu_kernel, b=b)

    total_bytes = rows * lanes * itemsize
    return pl.pallas_call(
        kernel,
        out_shape=jax.ShapeDtypeStruct((rows, lanes), x2d.dtype),
        grid_spec=pltpu.PrefetchScalarGridSpec(
            num_scalar_prefetch=0,
            grid=grid,
            in_specs=[pl.BlockSpec((block_rows, lanes), lambda i: (i, 0))],
            out_specs=pl.BlockSpec((block_rows, lanes), lambda i: (i, 0)),
        ),
        compiler_params=pltpu.CompilerParams(
            dimension_semantics=("parallel",),
            vmem_limit_bytes=_VMEM_LIMIT_BYTES,
        ),
        cost_estimate=pl.CostEstimate(
            flops=2 * rows * lanes,
            transcendentals=0,
            bytes_accessed=2 * total_bytes,
        ),
    )(x2d)


def abrelu(x, rho=1):
    """Elementwise ABReLU over an arbitrarily-shaped array (e.g. NCHW)."""
    b = B(rho)
    orig_shape = x.shape
    total = x.size

    lanes = _pick_lanes(total)
    if lanes is not None:
        # Fast path: reshape only (a view / bitcast for row-major layouts,
        # no HBM copies).
        x2d = x.reshape(total // lanes, lanes)
        out2d = _run_2d(x2d, b)
        return out2d.reshape(orig_shape)

    # Rare slow path: flat size not a multiple of 128 -> pad only to the next
    # multiple of 128, then pick the widest lane count dividing the padded size.
    padded = -(-total // 128) * 128
    x_flat = jnp.pad(jnp.ravel(x), (0, padded - total))  # abrelu(0) == 0, so padding is safe
    lanes = _pick_lanes(padded)
    out2d = _run_2d(x_flat.reshape(padded // lanes, lanes), b)
    return out2d.reshape(-1)[:total].reshape(orig_shape)


def abrelu_ref(x, rho=1):
    b = B(rho)
    xf = x.astype(jnp.float32)
    return (b * jnp.minimum(xf, 0.0) + jnp.maximum(xf, 0.0)).astype(x.dtype)


if __name__ == "__main__":
    key = jax.random.PRNGKey(0)
    k0, k1, k2, k3 = jax.random.split(key, 4)

    # NCHW input, consistent with a conv-style feature map.
    x = jax.random.normal(k0, (2, 4, 16, 16), dtype=jnp.float32)
    for rho in (1, 1.5, 0.5):
        out = jax.block_until_ready(abrelu(x, rho=rho))
        ref = abrelu_ref(x, rho=rho)
        assert out.shape == x.shape and out.dtype == x.dtype
        assert jnp.allclose(out, ref, atol=1e-6, rtol=1e-6), f"mismatch rho={rho}"

    # Multi-block case (grid >= 2 steps; exercises megacore sharding + masking).
    y = jax.random.normal(k1, (96 * 8192,), dtype=jnp.float32)
    out_y = jax.block_until_ready(abrelu(y, rho=1.5))
    assert jnp.allclose(out_y, abrelu_ref(y, rho=1.5), atol=1e-6, rtol=1e-6)

    # Odd size (not a multiple of 128) exercises the padded slow path.
    z = jax.random.normal(k2, (3, 5, 7, 11), dtype=jnp.float32)
    out_z = jax.block_until_ready(abrelu(z, rho=0.5))
    assert jnp.allclose(out_z, abrelu_ref(z, rho=0.5), atol=1e-6, rtol=1e-6)

    # Low-precision input exercises the dtype-aware compute path.
    w = jax.random.normal(k3, (4, 8, 32), dtype=jnp.bfloat16)
    out_w = jax.block_until_ready(abrelu(w, rho=1.5))
    assert out_w.dtype == jnp.bfloat16
    assert jnp.allclose(out_w.astype(jnp.float32),
                        abrelu_ref(w, rho=1.5).astype(jnp.float32),
                        atol=2e-2, rtol=2e-2)

    print("KERNEL_OK")
</pallas_src>

<mosaic_0001>
module attributes {stable_mosaic.version = 11 : i64} {
  func.func @_abrelu_kernel(%arg0: i32, %arg1: memref<1x2048xf32, #tpu.memory_space<vmem>>, %arg2: memref<1x2048xf32, #tpu.memory_space<vmem>>) attributes {dimension_semantics = [#tpu.dimension_semantics<parallel>], iteration_bounds = array<i64: 1>, scalar_prefetch = 0 : i64, scratch_operands = 0 : i64, tpu.core_type = #tpu.core_type<tc>, window_params = [{transform_indices = @transform_0, window_bounds = array<i64: 1, 2048>}, {transform_indices = @transform_1, window_bounds = array<i64: 1, 2048>}]} {
    %c0 = arith.constant 0 : index
    %c0_0 = arith.constant 0 : index
    %0 = vector.load %arg1[%c0, %c0_0] : memref<1x2048xf32, #tpu.memory_space<vmem>>, vector<1x2048xf32>
    %cst = arith.constant 0.000000e+00 : f32
    %1 = vector.broadcast %cst : f32 to vector<1x2048xf32>
    %2 = arith.maximumf %0, %1 : vector<1x2048xf32>
    %c0_1 = arith.constant 0 : index
    %c0_2 = arith.constant 0 : index
    %3 = vector.load %arg2[%c0_1, %c0_2] : memref<1x2048xf32, #tpu.memory_space<vmem>>, vector<1x2048xf32>
    tpu.vector_store %arg2[%c0_1, %c0_2], %2 {strides = array<i32>} : memref<1x2048xf32, #tpu.memory_space<vmem>>, vector<1x2048xf32>,
    return
  }
  func.func @transform_0(%arg0: i32) -> (i32, i32) {
    %c0_i32 = arith.constant 0 : i32
    %c0_i32_0 = arith.constant 0 : i32
    return %arg0, %c0_i32 : i32, i32
  }
  func.func @transform_1(%arg0: i32) -> (i32, i32) {
    %c0_i32 = arith.constant 0 : i32
    %c0_i32_0 = arith.constant 0 : i32
    return %arg0, %c0_i32 : i32, i32
  }
}

</mosaic_0001>

<llo_original>
// kernel: tpu_custom_call.1
$region0: #{tpu_custom_call.1}
  #allocation0 [shape = 'u32[]', space=smem, size = 0x4, offset = 0x4, fixed_abs, tag = 'smem constant byte address 0x4 - core index']
  #allocation1 [shape = 'u32[144,128]{1,0:T(1,128)}', space=vmem, size = 0x12000, scoped, tag = 'internal scratch']
  %s0 = inlined_call_operand.hbm [shape: f32[1,2048], index: 0, kind: input, shape index: {}]
  %s1 = inlined_call_operand.hbm [shape: f32[1,2048], index: 1, kind: output, shape index: {}]
  %s2 = sld [smem:[#allocation0]]
  $region18: #{tpu_custom_call.1} parent=0
    _
  %s4 = ssub.s32 1, %s2
  %s5 = scalar_select 0, %s4, %s2
  $region1: #{tpu_custom_call.1} parent=0
    #allocation2 [shape = 'u8[8192]{0}', space=vmem, size = 0x2000, scoped, tag = 'input window, operand 0, single buffered']
    #allocation3 [shape = 's32[1]{0}', space=sflag, size = 0x4, scoped, tag = 'scoped memory for tpu_custom_call.1']
    #allocation4 [shape = 's32[1]{0}', space=sflag, size = 0x4, scoped, tag = 'scoped memory for tpu_custom_call.1']
    #allocation5 [shape = 'u8[8192]{0}', space=vmem, size = 0x2000, scoped, tag = 'output window, operand 0, single buffered']
    %6 = vsyncpa [#allocation3], 0
    %7 = vsyncpa [#allocation4], 0
    // Predicated region
    $region2: #{tpu_custom_call.1} parent=1 // pred_check
      _
    $region3: #{tpu_custom_call.1} parent=1 // pred_check_branch
      %9 = sbr.rel (0) target = $region5
    $region4: #{tpu_custom_call.1} parent=1 // pred_region
      %s11 = ssub.s32 256, 256
      %12 = vsyncadd [#allocation3], %s11
      %s14 = sshll.u32 [#allocation2], 4
      %s15 = int_to_ptr.vmem [resolvable:$true] %s14
      %17 = dma.hbm_to_vmem [thread:$0]  %s0, 256, %s15, [#allocation3]
    $region5: #{tpu_custom_call.1} parent=1 // pred_fallthru
      _
    // Predicated region
    $region6: #{tpu_custom_call.1} parent=1 // pred_check
      _
    $region7: #{tpu_custom_call.1} parent=1 // pred_check_branch
      %19 = sbr.rel (0) target = $region9
    $region8: #{tpu_custom_call.1} parent=1 // pred_region
      %20 = dma.done [#allocation3], 256
    $region9: #{tpu_custom_call.1} parent=1 // pred_fallthru
      _
    %v21 = vld [vmem:[#allocation2] sm:$0xff]
    %v22 = vld [vmem:[#allocation2 + $0x8] sm:$0xff]
    %v23 = vmax.f32 %v21, 0.0
    %v24 = vmax.f32 %v22, 0.0
    %25 = vst [vmem:[#allocation5] sm:$0xff] %v23
    %26 = vst [vmem:[#allocation5 + $0x8] sm:$0xff] %v24
    // Predicated region
    $region10: #{tpu_custom_call.1} parent=1 // pred_check
      _
    $region11: #{tpu_custom_call.1} parent=1 // pred_check_branch
      %28 = sbr.rel (0) target = $region13
    $region12: #{tpu_custom_call.1} parent=1 // pred_region
      %s30 = ssub.s32 256, 256
      %31 = vsyncadd [#allocation4], %s30
      %s33 = sshll.u32 [#allocation5], 4
      %s34 = int_to_ptr.vmem [resolvable:$true] %s33
      %36 = dma.vmem_to_hbm [thread:$0]  %s34, 256, %s1, [#allocation4]
    $region13: #{tpu_custom_call.1} parent=1 // pred_fallthru
      _
    // Predicated region
    $region14: #{tpu_custom_call.1} parent=1 // pred_check
      _
    $region15: #{tpu_custom_call.1} parent=1 // pred_check_branch
      %38 = sbr.rel (0) target = $region17
    $region16: #{tpu_custom_call.1} parent=1 // pred_region
      %39 = dma.done [#allocation4], 256
    $region17: #{tpu_custom_call.1} parent=1 // pred_fallthru
      _
    %40 = vsyncpa [#allocation3], 1
    %41 = vsyncpa [#allocation4], 1

</llo_original>
